<compile_context>
chip_gen: v7x
topology: tpu7x:2x2x1
jax: 0.10.0
libtpu: 0.0.40
codegen_flags: <defaults>
</compile_context>

<pallas_src>
import functools

import jax
import jax.numpy as jnp
from jax.experimental import pallas as pl
from jax.experimental.pallas import tpu as pltpu


# ------------------------------ Pallas kernel ---------------------------------
def _concat_block_kernel(x_ref, w12_ref, w3_ref, w4_ref, w5_ref, b_ref, o_ref, *, H, W, C):
    """One image per grid step.  Layout: channels on sublanes, pixels (H*W) on lanes."""
    HW = H * W
    f32 = jnp.float32

    b = b_ref[...]                                                   # (2C, 4)

    # ---- stage 1: conv1 | conv2 (1x1, BN folded) fused along the output-channel axis ----
    x = x_ref[0]                                                     # (Cin, HW)
    y01 = jnp.dot(w12_ref[...], x, preferred_element_type=f32)       # (2C, HW)
    y01 = jnp.maximum(y01 + b[:, 0:1], 0.0)                          # rows [0:C]=x0, [C:2C]=x1

    # ---- per-pixel (row, col) coordinates as lane-dense (1, HW) rows ----
    fidx = jax.lax.broadcasted_iota(jnp.int32, (1, HW), 1)
    if (W & (W - 1)) == 0 and (H & (H - 1)) == 0:    # power-of-two: cheap VPU bit ops
        xx = jnp.bitwise_and(fidx, W - 1)
        yy = jnp.bitwise_and(jnp.right_shift(fidx, int(W).bit_length() - 1), H - 1)
    else:                                            # fallback: vector integer division
        q = fidx % HW
        yy = q // W
        xx = q - yy * W

    def conv3x3(src, w_ref):
        """3x3 'same' conv: 9 XLU rolls + boundary masks, stacked into one K=9*C matmul."""
        taps = []
        for t in range(9):
            dy, dx = t // 3 - 1, t % 3 - 1
            s = dy * W + dx
            # tap[p] = src[p + s]  (pltpu.roll follows jnp.roll semantics: out[i] = in[i-k])
            tap = src if s == 0 else pltpu.roll(src, (-s) % HW, 1)
            # zero lanes whose source pixel lies outside the image (also kills roll wrap)
            m = None
            if dy < 0:
                m = yy >= -dy
            if dy > 0:
                m = yy < H - dy
            if dx < 0:
                cond = xx >= -dx
                m = cond if m is None else (m & cond)
            if dx > 0:
                cond = xx < W - dx
                m = cond if m is None else (m & cond)
            if m is not None:
                tap = jnp.where(m, tap, 0.0)
            taps.append(tap)
        stacked = jnp.concatenate(taps, axis=0)                      # (9C, HW)
        return jnp.dot(w_ref[...], stacked, preferred_element_type=f32)   # (C, HW)

    # ---- stage 2: conv3 (3x3) on x1 = sublane slice of y01 (no zero-embedding) ----
    x2 = jnp.maximum(conv3x3(y01[C:2 * C, :], w3_ref) + b[:C, 1:2], 0.0)
    # ---- stage 3: conv4 (3x3) on x2 ----
    x3 = jnp.maximum(conv3x3(x2, w4_ref) + b[:C, 2:3], 0.0)

    # ---- stage 4: conv5 (1x1) on concat(x0,x1,x2,x3): concat == sublane stack, one dot ----
    xcat = jnp.concatenate([y01, x2, x3], axis=0)                    # (4C, HW)
    y = jnp.dot(w5_ref[...], xcat, preferred_element_type=f32)       # (2C, HW)
    o_ref[0] = jnp.maximum(y + b[:, 3:4], 0.0).astype(o_ref.dtype)


# ------------------------------- wrapper ---------------------------------------
def _concat_block(x_nchw, fp):
    """x_nchw: (N, Cin, H, W) f32; fp: fused params from prepare_fused_params."""
    N, Cin, H, W = x_nchw.shape
    C2 = fp["w5"].shape[0]            # 2 * Cout
    Cout = C2 // 2
    HW = H * W
    kern = functools.partial(_concat_block_kernel, H=H, W=W, C=Cout)
    out = pl.pallas_call(
        kern,
        out_shape=jax.ShapeDtypeStruct((N, C2, HW), jnp.float32),
        grid=(N,),
        in_specs=[
            pl.BlockSpec((1, Cin, HW), lambda n: (n, 0, 0)),      # per-image (Cin, HW) slab
            pl.BlockSpec((C2, Cin), lambda n: (0, 0)),            # fused conv1|conv2 weight
            pl.BlockSpec((Cout, 9 * Cout), lambda n: (0, 0)),     # conv3 tap-stacked weight
            pl.BlockSpec((Cout, 9 * Cout), lambda n: (0, 0)),     # conv4 tap-stacked weight
            pl.BlockSpec((C2, 4 * Cout), lambda n: (0, 0)),       # conv5 weight
            pl.BlockSpec((C2, 4), lambda n: (0, 0)),              # packed biases
        ],
        out_specs=pl.BlockSpec((1, C2, HW), lambda n: (n, 0, 0)),
        compiler_params=pltpu.CompilerParams(dimension_semantics=("parallel",)),
    )(x_nchw.reshape(N, Cin, HW),
      fp["w12"], fp["w3s"], fp["w4s"], fp["w5"], fp["biases"])
    return out.reshape(N, C2, H, W)                               # NCHW, like PyTorch


concat_block = jax.jit(_concat_block)


# --------------------------- parameter construction ----------------------------
def _fold_bn(gamma, beta, mean, var, eps=1e-5):
    scale = gamma / jnp.sqrt(var + eps)
    bias = beta - mean * scale
    return scale[None, :].astype(jnp.float32), bias[None, :].astype(jnp.float32)


def make_params(key, in_channels, out_channels):
    """Deterministic synthetic raw params for all 5 BaseConv layers (inference BN)."""
    def conv_w(k, shape):
        return jax.random.normal(k, shape, jnp.float32) * 0.1

    def bn(k, c):
        kg, kb, km, kv = jax.random.split(k, 4)
        gamma = 1.0 + 0.1 * jax.random.normal(kg, (c,), jnp.float32)
        beta = 0.1 * jax.random.normal(kb, (c,), jnp.float32)
        mean = 0.1 * jax.random.normal(km, (c,), jnp.float32)
        var = jnp.abs(jax.random.normal(kv, (c,), jnp.float32)) + 0.5
        return _fold_bn(gamma, beta, mean, var)

    ks = jax.random.split(key, 10)
    p = {}
    p["w1"] = conv_w(ks[0], (in_channels, out_channels));           p["s1"], p["b1"] = bn(ks[1], out_channels)
    p["w2"] = conv_w(ks[2], (in_channels, out_channels));           p["s2"], p["b2"] = bn(ks[3], out_channels)
    p["w3"] = conv_w(ks[4], (3, 3, out_channels, out_channels));    p["s3"], p["b3"] = bn(ks[5], out_channels)
    p["w4"] = conv_w(ks[6], (3, 3, out_channels, out_channels));    p["s4"], p["b4"] = bn(ks[7], out_channels)
    p["w5"] = conv_w(ks[8], (out_channels * 4, out_channels * 2));  p["s5"], p["b5"] = bn(ks[9], out_channels * 2)
    return p


def prepare_fused_params(p):
    """Fold BN scales into weights and build (Cout-major) fused-kernel operands."""
    C = p["w1"].shape[1]

    # stage 1: conv1 | conv2 fused along Cout -> (2C, Cin), rows 0:C = conv1, C:2C = conv2
    w12 = jnp.concatenate([(p["w1"] * p["s1"]).T, (p["w2"] * p["s2"]).T], axis=0)

    def stack_taps(w_hwio, scale):
        # (3,3,Cin,Cout) -> (Cout, 9*Cin) with column order [tap*Cin + cin], tap = ky*3+kx
        cin, cout = w_hwio.shape[2], w_hwio.shape[3]
        wf = (w_hwio * scale[0]).reshape(9, cin, cout)               # (tap, cin, cout)
        return jnp.transpose(wf, (2, 0, 1)).reshape(cout, 9 * cin)

    w3s = stack_taps(p["w3"], p["s3"])                               # (C, 9C)
    w4s = stack_taps(p["w4"], p["s4"])                               # (C, 9C)
    w5 = (p["w5"] * p["s5"]).T                                       # (2C, 4C)

    biases = jnp.zeros((2 * C, 4), jnp.float32)                      # channel on sublanes
    biases = biases.at[:, 0].set(jnp.concatenate([p["b1"][0], p["b2"][0]]))
    biases = biases.at[:C, 1].set(p["b3"][0])
    biases = biases.at[:C, 2].set(p["b4"][0])
    biases = biases.at[:, 3].set(p["b5"][0])
    return {"w12": w12, "w3s": w3s, "w4s": w4s, "w5": w5, "biases": biases}


# ----------------------------- pure-JAX reference ------------------------------
def _ref_conv(x, w_hwio, scale, bias):
    y = jax.lax.conv_general_dilated(
        x, w_hwio, window_strides=(1, 1), padding="SAME",
        dimension_numbers=("NCHW", "HWIO", "NCHW"))
    return jnp.maximum(y * scale[0][None, :, None, None] + bias[0][None, :, None, None], 0.0)


def concat_block_ref(x, p):
    x0 = _ref_conv(x, p["w1"][None, None], p["s1"], p["b1"])
    x1 = _ref_conv(x, p["w2"][None, None], p["s2"], p["b2"])
    x2 = _ref_conv(x1, p["w3"], p["s3"], p["b3"])
    x3 = _ref_conv(x2, p["w4"], p["s4"], p["b4"])
    xc = jnp.concatenate((x0, x1, x2, x3), axis=1)
    return _ref_conv(xc, p["w5"][None, None], p["s5"], p["b5"])


# ----------------------------------- main ---------------------------------------
if __name__ == "__main__":
    key = jax.random.PRNGKey(0)
    kx, kp = jax.random.split(key)

    N, Cin, H, W = 2, 4, 16, 16          # PyTorch-style NCHW sizes
    Cout = 8

    x_nchw = jax.random.normal(kx, (N, Cin, H, W), jnp.float32)

    raw = make_params(kp, Cin, Cout)
    fused = prepare_fused_params(raw)

    out = jax.block_until_ready(concat_block(x_nchw, fused))        # (N, 2*Cout, H, W)
    ref = jax.block_until_ready(concat_block_ref(x_nchw, raw))

    assert out.shape == (N, 2 * Cout, H, W), out.shape
    max_err = float(jnp.max(jnp.abs(out - ref)))
    assert jnp.allclose(out, ref, atol=1e-4, rtol=1e-4), max_err

    print("KERNEL_OK")
</pallas_src>

<mosaic_0001>
module attributes {stable_mosaic.version = 11 : i64} {
  func.func @_concat_block_kernel(%arg0: i32, %arg1: memref<1x4x256xf32, #tpu.memory_space<vmem>>, %arg2: memref<16x4xf32, #tpu.memory_space<vmem>>, %arg3: memref<8x72xf32, #tpu.memory_space<vmem>>, %arg4: memref<8x72xf32, #tpu.memory_space<vmem>>, %arg5: memref<16x32xf32, #tpu.memory_space<vmem>>, %arg6: memref<16x4xf32, #tpu.memory_space<vmem>>, %arg7: memref<1x16x256xf32, #tpu.memory_space<vmem>>) attributes {dimension_semantics = [#tpu.dimension_semantics<parallel>], iteration_bounds = array<i64: 2>, scalar_prefetch = 0 : i64, scratch_operands = 0 : i64, tpu.core_type = #tpu.core_type<tc>, window_params = [{transform_indices = @transform_0, window_bounds = array<i64: 1, 4, 256>}, {pipeline_mode = #tpu.pipeline_mode<synchronous>, transform_indices = @transform_1, window_bounds = array<i64: 16, 4>}, {pipeline_mode = #tpu.pipeline_mode<synchronous>, transform_indices = @transform_2, window_bounds = array<i64: 8, 72>}, {pipeline_mode = #tpu.pipeline_mode<synchronous>, transform_indices = @transform_3, window_bounds = array<i64: 8, 72>}, {pipeline_mode = #tpu.pipeline_mode<synchronous>, transform_indices = @transform_4, window_bounds = array<i64: 16, 32>}, {pipeline_mode = #tpu.pipeline_mode<synchronous>, transform_indices = @transform_5, window_bounds = array<i64: 16, 4>}, {transform_indices = @transform_6, window_bounds = array<i64: 1, 16, 256>}]} {
    %c0 = arith.constant 0 : index
    %c0_0 = arith.constant 0 : index
    %0 = vector.load %arg6[%c0, %c0_0] : memref<16x4xf32, #tpu.memory_space<vmem>>, vector<16x4xf32>
    %c0_1 = arith.constant 0 : index
    %c0_2 = arith.constant 0 : index
    %c0_3 = arith.constant 0 : index
    %1 = vector.load %arg1[%c0_1, %c0_2, %c0_3] : memref<1x4x256xf32, #tpu.memory_space<vmem>>, vector<1x4x256xf32>
    %2 = vector.shape_cast %1 : vector<1x4x256xf32> to vector<4x256xf32>
    %c0_4 = arith.constant 0 : index
    %c0_5 = arith.constant 0 : index
    %3 = vector.load %arg2[%c0_4, %c0_5] : memref<16x4xf32, #tpu.memory_space<vmem>>, vector<16x4xf32>
    %cst = arith.constant dense<0.000000e+00> : vector<16x256xf32>
    %4 = tpu.matmul %3, %2, %cst {dimension_numbers = #tpu.dot_dimension_numbers<[1], [0], [0], [1], [0, 0, 1, 1], [], []>} : vector<16x4xf32>, vector<4x256xf32>, vector<16x256xf32> -> vector<16x256xf32>
    %5 = vector.extract_strided_slice %0 {offsets = [0, 0], sizes = [16, 1], strides = [1, 1]} : vector<16x4xf32> to vector<16x1xf32>
    %6 = vector.broadcast %5 : vector<16x1xf32> to vector<16x256xf32>
    %7 = arith.addf %4, %6 : vector<16x256xf32>
    %cst_6 = arith.constant 0.000000e+00 : f32
    %8 = vector.broadcast %cst_6 : f32 to vector<16x256xf32>
    %9 = arith.maximumf %7, %8 : vector<16x256xf32>
    %10 = tpu.iota {dimensions = array<i32: 1>} : vector<1x256xi32>
    %c15_i32 = arith.constant 15 : i32
    %11 = vector.broadcast %c15_i32 : i32 to vector<1x256xi32>
    %12 = arith.andi %10, %11 : vector<1x256xi32>
    %c4_i32 = arith.constant 4 : i32
    %13 = vector.broadcast %c4_i32 : i32 to vector<1x256xi32>
    %14 = arith.shrsi %10, %13 : vector<1x256xi32>
    %c15_i32_7 = arith.constant 15 : i32
    %15 = vector.broadcast %c15_i32_7 : i32 to vector<1x256xi32>
    %16 = arith.andi %14, %15 : vector<1x256xi32>
    %17 = vector.extract_strided_slice %9 {offsets = [8, 0], sizes = [8, 256], strides = [1, 1]} : vector<16x256xf32> to vector<8x256xf32>
    %c17_i32 = arith.constant 17 : i32
    %18 = tpu.dynamic_rotate %17 by %c17_i32 dim 1 : vector<8x256xf32>, i32 -> vector<8x256xf32>
    %c1_i32 = arith.constant 1 : i32
    %19 = vector.broadcast %c1_i32 : i32 to vector<1x256xi32>
    %20 = arith.cmpi sge, %16, %19 : vector<1x256xi32>
    %c1_i32_8 = arith.constant 1 : i32
    %21 = vector.broadcast %c1_i32_8 : i32 to vector<1x256xi32>
    %22 = arith.cmpi sge, %12, %21 : vector<1x256xi32>
    %23 = arith.andi %20, %22 : vector<1x256xi1>
    %cst_9 = arith.constant 0.000000e+00 : f32
    %24 = vector.shape_cast %23 : vector<1x256xi1> to vector<1x256xi1>
    %25 = vector.broadcast %24 : vector<1x256xi1> to vector<8x256xi1>
    %26 = vector.broadcast %cst_9 : f32 to vector<8x256xf32>
    %27 = arith.select %25, %18, %26 : vector<8x256xi1>, vector<8x256xf32>
    %c16_i32 = arith.constant 16 : i32
    %28 = tpu.dynamic_rotate %17 by %c16_i32 dim 1 : vector<8x256xf32>, i32 -> vector<8x256xf32>
    %c1_i32_10 = arith.constant 1 : i32
    %29 = vector.broadcast %c1_i32_10 : i32 to vector<1x256xi32>
    %30 = arith.cmpi sge, %16, %29 : vector<1x256xi32>
    %cst_11 = arith.constant 0.000000e+00 : f32
    %31 = vector.shape_cast %30 : vector<1x256xi1> to vector<1x256xi1>
    %32 = vector.broadcast %31 : vector<1x256xi1> to vector<8x256xi1>
    %33 = vector.broadcast %cst_11 : f32 to vector<8x256xf32>
    %34 = arith.select %32, %28, %33 : vector<8x256xi1>, vector<8x256xf32>
    %c15_i32_12 = arith.constant 15 : i32
    %35 = tpu.dynamic_rotate %17 by %c15_i32_12 dim 1 : vector<8x256xf32>, i32 -> vector<8x256xf32>
    %c1_i32_13 = arith.constant 1 : i32
    %36 = vector.broadcast %c1_i32_13 : i32 to vector<1x256xi32>
    %37 = arith.cmpi sge, %16, %36 : vector<1x256xi32>
    %c15_i32_14 = arith.constant 15 : i32
    %38 = vector.broadcast %c15_i32_14 : i32 to vector<1x256xi32>
    %39 = arith.cmpi slt, %12, %38 : vector<1x256xi32>
    %40 = arith.andi %37, %39 : vector<1x256xi1>
    %cst_15 = arith.constant 0.000000e+00 : f32
    %41 = vector.shape_cast %40 : vector<1x256xi1> to vector<1x256xi1>
    %42 = vector.broadcast %41 : vector<1x256xi1> to vector<8x256xi1>
    %43 = vector.broadcast %cst_15 : f32 to vector<8x256xf32>
    %44 = arith.select %42, %35, %43 : vector<8x256xi1>, vector<8x256xf32>
    %c1_i32_16 = arith.constant 1 : i32
    %45 = tpu.dynamic_rotate %17 by %c1_i32_16 dim 1 : vector<8x256xf32>, i32 -> vector<8x256xf32>
    %c1_i32_17 = arith.constant 1 : i32
    %46 = vector.broadcast %c1_i32_17 : i32 to vector<1x256xi32>
    %47 = arith.cmpi sge, %12, %46 : vector<1x256xi32>
    %cst_18 = arith.constant 0.000000e+00 : f32
    %48 = vector.shape_cast %47 : vector<1x256xi1> to vector<1x256xi1>
    %49 = vector.broadcast %48 : vector<1x256xi1> to vector<8x256xi1>
    %50 = vector.broadcast %cst_18 : f32 to vector<8x256xf32>
    %51 = arith.select %49, %45, %50 : vector<8x256xi1>, vector<8x256xf32>
    %c255_i32 = arith.constant 255 : i32
    %52 = tpu.dynamic_rotate %17 by %c255_i32 dim 1 : vector<8x256xf32>, i32 -> vector<8x256xf32>
    %c15_i32_19 = arith.constant 15 : i32
    %53 = vector.broadcast %c15_i32_19 : i32 to vector<1x256xi32>
    %54 = arith.cmpi slt, %12, %53 : vector<1x256xi32>
    %cst_20 = arith.constant 0.000000e+00 : f32
    %55 = vector.shape_cast %54 : vector<1x256xi1> to vector<1x256xi1>
    %56 = vector.broadcast %55 : vector<1x256xi1> to vector<8x256xi1>
    %57 = vector.broadcast %cst_20 : f32 to vector<8x256xf32>
    %58 = arith.select %56, %52, %57 : vector<8x256xi1>, vector<8x256xf32>
    %c241_i32 = arith.constant 241 : i32
    %59 = tpu.dynamic_rotate %17 by %c241_i32 dim 1 : vector<8x256xf32>, i32 -> vector<8x256xf32>
    %c15_i32_21 = arith.constant 15 : i32
    %60 = vector.broadcast %c15_i32_21 : i32 to vector<1x256xi32>
    %61 = arith.cmpi slt, %16, %60 : vector<1x256xi32>
    %c1_i32_22 = arith.constant 1 : i32
    %62 = vector.broadcast %c1_i32_22 : i32 to vector<1x256xi32>
    %63 = arith.cmpi sge, %12, %62 : vector<1x256xi32>
    %64 = arith.andi %61, %63 : vector<1x256xi1>
    %cst_23 = arith.constant 0.000000e+00 : f32
    %65 = vector.shape_cast %64 : vector<1x256xi1> to vector<1x256xi1>
    %66 = vector.broadcast %65 : vector<1x256xi1> to vector<8x256xi1>
    %67 = vector.broadcast %cst_23 : f32 to vector<8x256xf32>
    %68 = arith.select %66, %59, %67 : vector<8x256xi1>, vector<8x256xf32>
    %c240_i32 = arith.constant 240 : i32
    %69 = tpu.dynamic_rotate %17 by %c240_i32 dim 1 : vector<8x256xf32>, i32 -> vector<8x256xf32>
    %c15_i32_24 = arith.constant 15 : i32
    %70 = vector.broadcast %c15_i32_24 : i32 to vector<1x256xi32>
    %71 = arith.cmpi slt, %16, %70 : vector<1x256xi32>
    %cst_25 = arith.constant 0.000000e+00 : f32
    %72 = vector.shape_cast %71 : vector<1x256xi1> to vector<1x256xi1>
    %73 = vector.broadcast %72 : vector<1x256xi1> to vector<8x256xi1>
    %74 = vector.broadcast %cst_25 : f32 to vector<8x256xf32>
    %75 = arith.select %73, %69, %74 : vector<8x256xi1>, vector<8x256xf32>
    %c239_i32 = arith.constant 239 : i32
    %76 = tpu.dynamic_rotate %17 by %c239_i32 dim 1 : vector<8x256xf32>, i32 -> vector<8x256xf32>
    %c15_i32_26 = arith.constant 15 : i32
    %77 = vector.broadcast %c15_i32_26 : i32 to vector<1x256xi32>
    %78 = arith.cmpi slt, %16, %77 : vector<1x256xi32>
    %c15_i32_27 = arith.constant 15 : i32
    %79 = vector.broadcast %c15_i32_27 : i32 to vector<1x256xi32>
    %80 = arith.cmpi slt, %12, %79 : vector<1x256xi32>
    %81 = arith.andi %78, %80 : vector<1x256xi1>
    %cst_28 = arith.constant 0.000000e+00 : f32
    %82 = vector.shape_cast %81 : vector<1x256xi1> to vector<1x256xi1>
    %83 = vector.broadcast %82 : vector<1x256xi1> to vector<8x256xi1>
    %84 = vector.broadcast %cst_28 : f32 to vector<8x256xf32>
    %85 = arith.select %83, %76, %84 : vector<8x256xi1>, vector<8x256xf32>
    %86 = tpu.concatenate %27, %34, %44, %51, %17, %58, %68, %75, %85 in 0 : vector<8x256xf32>, vector<8x256xf32>, vector<8x256xf32>, vector<8x256xf32>, vector<8x256xf32>, vector<8x256xf32>, vector<8x256xf32>, vector<8x256xf32>, vector<8x256xf32> -> vector<72x256xf32>
    %c0_29 = arith.constant 0 : index
    %c0_30 = arith.constant 0 : index
    %87 = vector.load %arg3[%c0_29, %c0_30] : memref<8x72xf32, #tpu.memory_space<vmem>>, vector<8x72xf32>
    %cst_31 = arith.constant dense<0.000000e+00> : vector<8x256xf32>
    %88 = tpu.matmul %87, %86, %cst_31 {dimension_numbers = #tpu.dot_dimension_numbers<[1], [0], [0], [1], [0, 0, 1, 1], [], []>} : vector<8x72xf32>, vector<72x256xf32>, vector<8x256xf32> -> vector<8x256xf32>
    %89 = vector.extract_strided_slice %0 {offsets = [0, 1], sizes = [8, 1], strides = [1, 1]} : vector<16x4xf32> to vector<8x1xf32>
    %90 = vector.broadcast %89 : vector<8x1xf32> to vector<8x256xf32>
    %91 = arith.addf %88, %90 : vector<8x256xf32>
    %cst_32 = arith.constant 0.000000e+00 : f32
    %92 = vector.broadcast %cst_32 : f32 to vector<8x256xf32>
    %93 = arith.maximumf %91, %92 : vector<8x256xf32>
    %c17_i32_33 = arith.constant 17 : i32
    %94 = tpu.dynamic_rotate %93 by %c17_i32_33 dim 1 : vector<8x256xf32>, i32 -> vector<8x256xf32>
    %c1_i32_34 = arith.constant 1 : i32
    %95 = vector.broadcast %c1_i32_34 : i32 to vector<1x256xi32>
    %96 = arith.cmpi sge, %16, %95 : vector<1x256xi32>
    %c1_i32_35 = arith.constant 1 : i32
    %97 = vector.broadcast %c1_i32_35 : i32 to vector<1x256xi32>
    %98 = arith.cmpi sge, %12, %97 : vector<1x256xi32>
    %99 = arith.andi %96, %98 : vector<1x256xi1>
    %cst_36 = arith.constant 0.000000e+00 : f32
    %100 = vector.shape_cast %99 : vector<1x256xi1> to vector<1x256xi1>
    %101 = vector.broadcast %100 : vector<1x256xi1> to vector<8x256xi1>
    %102 = vector.broadcast %cst_36 : f32 to vector<8x256xf32>
    %103 = arith.select %101, %94, %102 : vector<8x256xi1>, vector<8x256xf32>
    %c16_i32_37 = arith.constant 16 : i32
    %104 = tpu.dynamic_rotate %93 by %c16_i32_37 dim 1 : vector<8x256xf32>, i32 -> vector<8x256xf32>
    %c1_i32_38 = arith.constant 1 : i32
    %105 = vector.broadcast %c1_i32_38 : i32 to vector<1x256xi32>
    %106 = arith.cmpi sge, %16, %105 : vector<1x256xi32>
    %cst_39 = arith.constant 0.000000e+00 : f32
    %107 = vector.shape_cast %106 : vector<1x256xi1> to vector<1x256xi1>
    %108 = vector.broadcast %107 : vector<1x256xi1> to vector<8x256xi1>
    %109 = vector.broadcast %cst_39 : f32 to vector<8x256xf32>
    %110 = arith.select %108, %104, %109 : vector<8x256xi1>, vector<8x256xf32>
    %c15_i32_40 = arith.constant 15 : i32
    %111 = tpu.dynamic_rotate %93 by %c15_i32_40 dim 1 : vector<8x256xf32>, i32 -> vector<8x256xf32>
    %c1_i32_41 = arith.constant 1 : i32
    %112 = vector.broadcast %c1_i32_41 : i32 to vector<1x256xi32>
    %113 = arith.cmpi sge, %16, %112 : vector<1x256xi32>
    %c15_i32_42 = arith.constant 15 : i32
    %114 = vector.broadcast %c15_i32_42 : i32 to vector<1x256xi32>
    %115 = arith.cmpi slt, %12, %114 : vector<1x256xi32>
    %116 = arith.andi %113, %115 : vector<1x256xi1>
    %cst_43 = arith.constant 0.000000e+00 : f32
    %117 = vector.shape_cast %116 : vector<1x256xi1> to vector<1x256xi1>
    %118 = vector.broadcast %117 : vector<1x256xi1> to vector<8x256xi1>
    %119 = vector.broadcast %cst_43 : f32 to vector<8x256xf32>
    %120 = arith.select %118, %111, %119 : vector<8x256xi1>, vector<8x256xf32>
    %c1_i32_44 = arith.constant 1 : i32
    %121 = tpu.dynamic_rotate %93 by %c1_i32_44 dim 1 : vector<8x256xf32>, i32 -> vector<8x256xf32>
    %c1_i32_45 = arith.constant 1 : i32
    %122 = vector.broadcast %c1_i32_45 : i32 to vector<1x256xi32>
    %123 = arith.cmpi sge, %12, %122 : vector<1x256xi32>
    %cst_46 = arith.constant 0.000000e+00 : f32
    %124 = vector.shape_cast %123 : vector<1x256xi1> to vector<1x256xi1>
    %125 = vector.broadcast %124 : vector<1x256xi1> to vector<8x256xi1>
    %126 = vector.broadcast %cst_46 : f32 to vector<8x256xf32>
    %127 = arith.select %125, %121, %126 : vector<8x256xi1>, vector<8x256xf32>
    %c255_i32_47 = arith.constant 255 : i32
    %128 = tpu.dynamic_rotate %93 by %c255_i32_47 dim 1 : vector<8x256xf32>, i32 -> vector<8x256xf32>
    %c15_i32_48 = arith.constant 15 : i32
    %129 = vector.broadcast %c15_i32_48 : i32 to vector<1x256xi32>
    %130 = arith.cmpi slt, %12, %129 : vector<1x256xi32>
    %cst_49 = arith.constant 0.000000e+00 : f32
    %131 = vector.shape_cast %130 : vector<1x256xi1> to vector<1x256xi1>
    %132 = vector.broadcast %131 : vector<1x256xi1> to vector<8x256xi1>
    %133 = vector.broadcast %cst_49 : f32 to vector<8x256xf32>
    %134 = arith.select %132, %128, %133 : vector<8x256xi1>, vector<8x256xf32>
    %c241_i32_50 = arith.constant 241 : i32
    %135 = tpu.dynamic_rotate %93 by %c241_i32_50 dim 1 : vector<8x256xf32>, i32 -> vector<8x256xf32>
    %c15_i32_51 = arith.constant 15 : i32
    %136 = vector.broadcast %c15_i32_51 : i32 to vector<1x256xi32>
    %137 = arith.cmpi slt, %16, %136 : vector<1x256xi32>
    %c1_i32_52 = arith.constant 1 : i32
    %138 = vector.broadcast %c1_i32_52 : i32 to vector<1x256xi32>
    %139 = arith.cmpi sge, %12, %138 : vector<1x256xi32>
    %140 = arith.andi %137, %139 : vector<1x256xi1>
    %cst_53 = arith.constant 0.000000e+00 : f32
    %141 = vector.shape_cast %140 : vector<1x256xi1> to vector<1x256xi1>
    %142 = vector.broadcast %141 : vector<1x256xi1> to vector<8x256xi1>
    %143 = vector.broadcast %cst_53 : f32 to vector<8x256xf32>
    %144 = arith.select %142, %135, %143 : vector<8x256xi1>, vector<8x256xf32>
    %c240_i32_54 = arith.constant 240 : i32
    %145 = tpu.dynamic_rotate %93 by %c240_i32_54 dim 1 : vector<8x256xf32>, i32 -> vector<8x256xf32>
    %c15_i32_55 = arith.constant 15 : i32
    %146 = vector.broadcast %c15_i32_55 : i32 to vector<1x256xi32>
    %147 = arith.cmpi slt, %16, %146 : vector<1x256xi32>
    %cst_56 = arith.constant 0.000000e+00 : f32
    %148 = vector.shape_cast %147 : vector<1x256xi1> to vector<1x256xi1>
    %149 = vector.broadcast %148 : vector<1x256xi1> to vector<8x256xi1>
    %150 = vector.broadcast %cst_56 : f32 to vector<8x256xf32>
    %151 = arith.select %149, %145, %150 : vector<8x256xi1>, vector<8x256xf32>
    %c239_i32_57 = arith.constant 239 : i32
    %152 = tpu.dynamic_rotate %93 by %c239_i32_57 dim 1 : vector<8x256xf32>, i32 -> vector<8x256xf32>
    %c15_i32_58 = arith.constant 15 : i32
    %153 = vector.broadcast %c15_i32_58 : i32 to vector<1x256xi32>
    %154 = arith.cmpi slt, %16, %153 : vector<1x256xi32>
    %c15_i32_59 = arith.constant 15 : i32
    %155 = vector.broadcast %c15_i32_59 : i32 to vector<1x256xi32>
    %156 = arith.cmpi slt, %12, %155 : vector<1x256xi32>
    %157 = arith.andi %154, %156 : vector<1x256xi1>
    %cst_60 = arith.constant 0.000000e+00 : f32
    %158 = vector.shape_cast %157 : vector<1x256xi1> to vector<1x256xi1>
    %159 = vector.broadcast %158 : vector<1x256xi1> to vector<8x256xi1>
    %160 = vector.broadcast %cst_60 : f32 to vector<8x256xf32>
    %161 = arith.select %159, %152, %160 : vector<8x256xi1>, vector<8x256xf32>
    %162 = tpu.concatenate %103, %110, %120, %127, %93, %134, %144, %151, %161 in 0 : vector<8x256xf32>, vector<8x256xf32>, vector<8x256xf32>, vector<8x256xf32>, vector<8x256xf32>, vector<8x256xf32>, vector<8x256xf32>, vector<8x256xf32>, vector<8x256xf32> -> vector<72x256xf32>
    %c0_61 = arith.constant 0 : index
    %c0_62 = arith.constant 0 : index
    %163 = vector.load %arg4[%c0_61, %c0_62] : memref<8x72xf32, #tpu.memory_space<vmem>>, vector<8x72xf32>
    %cst_63 = arith.constant dense<0.000000e+00> : vector<8x256xf32>
    %164 = tpu.matmul %163, %162, %cst_63 {dimension_numbers = #tpu.dot_dimension_numbers<[1], [0], [0], [1], [0, 0, 1, 1], [], []>} : vector<8x72xf32>, vector<72x256xf32>, vector<8x256xf32> -> vector<8x256xf32>
    %165 = vector.extract_strided_slice %0 {offsets = [0, 2], sizes = [8, 1], strides = [1, 1]} : vector<16x4xf32> to vector<8x1xf32>
    %166 = vector.broadcast %165 : vector<8x1xf32> to vector<8x256xf32>
    %167 = arith.addf %164, %166 : vector<8x256xf32>
    %cst_64 = arith.constant 0.000000e+00 : f32
    %168 = vector.broadcast %cst_64 : f32 to vector<8x256xf32>
    %169 = arith.maximumf %167, %168 : vector<8x256xf32>
    %170 = tpu.concatenate %9, %93, %169 in 0 : vector<16x256xf32>, vector<8x256xf32>, vector<8x256xf32> -> vector<32x256xf32>
    %c0_65 = arith.constant 0 : index
    %c0_66 = arith.constant 0 : index
    %171 = vector.load %arg5[%c0_65, %c0_66] : memref<16x32xf32, #tpu.memory_space<vmem>>, vector<16x32xf32>
    %cst_67 = arith.constant dense<0.000000e+00> : vector<16x256xf32>
    %172 = tpu.matmul %171, %170, %cst_67 {dimension_numbers = #tpu.dot_dimension_numbers<[1], [0], [0], [1], [0, 0, 1, 1], [], []>} : vector<16x32xf32>, vector<32x256xf32>, vector<16x256xf32> -> vector<16x256xf32>
    %173 = vector.extract_strided_slice %0 {offsets = [0, 3], sizes = [16, 1], strides = [1, 1]} : vector<16x4xf32> to vector<16x1xf32>
    %174 = vector.broadcast %173 : vector<16x1xf32> to vector<16x256xf32>
    %175 = arith.addf %172, %174 : vector<16x256xf32>
    %cst_68 = arith.constant 0.000000e+00 : f32
    %176 = vector.broadcast %cst_68 : f32 to vector<16x256xf32>
    %177 = arith.maximumf %175, %176 : vector<16x256xf32>
    %c0_69 = arith.constant 0 : index
    %c0_70 = arith.constant 0 : index
    %c0_71 = arith.constant 0 : index
    %178 = vector.load %arg7[%c0_69, %c0_70, %c0_71] : memref<1x16x256xf32, #tpu.memory_space<vmem>>, vector<1x16x256xf32>
    %179 = vector.shape_cast %178 : vector<1x16x256xf32> to vector<16x256xf32>
    %180 = vector.shape_cast %177 : vector<16x256xf32> to vector<1x16x256xf32>
    tpu.vector_store %arg7[%c0_69, %c0_70, %c0_71], %180 {strides = array<i32>} : memref<1x16x256xf32, #tpu.memory_space<vmem>>, vector<1x16x256xf32>,
    return
  }
  func.func @transform_0(%arg0: i32) -> (i32, i32, i32) {
    %c0_i32 = arith.constant 0 : i32
    %c0_i32_0 = arith.constant 0 : i32
    %c0_i32_1 = arith.constant 0 : i32
    return %arg0, %c0_i32, %c0_i32_0 : i32, i32, i32
  }
  func.func @transform_1(%arg0: i32) -> (i32, i32) {
    %c0_i32 = arith.constant 0 : i32
    %c0_i32_0 = arith.constant 0 : i32
    %c0_i32_1 = arith.constant 0 : i32
    return %c0_i32, %c0_i32_0 : i32, i32
  }
  func.func @transform_2(%arg0: i32) -> (i32, i32) {
    %c0_i32 = arith.constant 0 : i32
    %c0_i32_0 = arith.constant 0 : i32
    %c0_i32_1 = arith.constant 0 : i32
    return %c0_i32, %c0_i32_0 : i32, i32
  }
  func.func @transform_3(%arg0: i32) -> (i32, i32) {
    %c0_i32 = arith.constant 0 : i32
    %c0_i32_0 = arith.constant 0 : i32
    %c0_i32_1 = arith.constant 0 : i32
    return %c0_i32, %c0_i32_0 : i32, i32
  }
  func.func @transform_4(%arg0: i32) -> (i32, i32) {
    %c0_i32 = arith.constant 0 : i32
    %c0_i32_0 = arith.constant 0 : i32
    %c0_i32_1 = arith.constant 0 : i32
    return %c0_i32, %c0_i32_0 : i32, i32
  }
  func.func @transform_5(%arg0: i32) -> (i32, i32) {
    %c0_i32 = arith.constant 0 : i32
    %c0_i32_0 = arith.constant 0 : i32
    %c0_i32_1 = arith.constant 0 : i32
    return %c0_i32, %c0_i32_0 : i32, i32
  }
  func.func @transform_6(%arg0: i32) -> (i32, i32, i32) {
    %c0_i32 = arith.constant 0 : i32
    %c0_i32_0 = arith.constant 0 : i32
    %c0_i32_1 = arith.constant 0 : i32
    return %arg0, %c0_i32, %c0_i32_0 : i32, i32, i32
  }
}

</mosaic_0001>

<llo_original>
// kernel: _concat_block.1
$region0: #{_concat_block.1}
  #allocation0 [shape = 'u32[]', space=smem, size = 0x4, offset = 0x4, fixed_abs, tag = 'smem constant byte address 0x4 - core index']
  #allocation1 [shape = 'u32[144,128]{1,0:T(1,128)}', space=vmem, size = 0x12000, scoped, tag = 'internal scratch']
  %s0 = inlined_call_operand.vmem [shape: f32[2,4,256], index: 0, kind: input, shape index: {}]
  %s1 = inlined_call_operand.vmem [shape: f32[16,4], index: 1, kind: input, shape index: {}]
  %s2 = inlined_call_operand.vmem [shape: f32[8,72], index: 2, kind: input, shape index: {}]
  %s3 = inlined_call_operand.vmem [shape: f32[8,72], index: 3, kind: input, shape index: {}]
  %s4 = inlined_call_operand.vmem [shape: f32[16,32], index: 4, kind: input, shape index: {}]
  %s5 = inlined_call_operand.vmem [shape: f32[16,4], index: 5, kind: input, shape index: {}]
  %s6 = inlined_call_operand.vmem [shape: f32[2,16,256], index: 6, kind: output, shape index: {}]
  %s7 = sld [smem:[#allocation0]]
  $region57: #{_concat_block.1} parent=0
    _
  %s9 = ssub.s32 1, %s7
  %s10 = scalar_select 0, %s9, %s7
  loop: start=0, step=1, limit=4
  $region2: #{_concat_block.1} parent=0 // loop_pre_header
    _
  $region3: #{_concat_block.1} parent=0 // loop_header
    %s12 = sphi 0, %s16
    %p13 = scmp.ge.s32.totalorder %s12, 4
    %s22 = sphi 0, %s24
    %s25 = sphi 0, %s22
    %s26 = sphi 0, %s25
    %s42 = sphi 0, %s26
    %s46 = sphi 0, %s46
    %s48 = sphi 0, %s46
    %s49 = sphi 0, %s48
    %s63 = sphi 0, %s49
    %s67 = sphi 0, %s67
    %s69 = sphi 0, %s67
    %s70 = sphi 0, %s69
    %s84 = sphi 0, %s70
    %s88 = sphi 0, %s88
    %s90 = sphi 0, %s88
    %s91 = sphi 0, %s90
    %s105 = sphi 0, %s91
    %s109 = sphi 0, %s109
    %s111 = sphi 0, %s109
    %s112 = sphi 0, %s111
    %s126 = sphi 0, %s112
    %s130 = sphi 0, %s130
    %s132 = sphi 0, %s130
    %s133 = sphi 0, %s132
    %s147 = sphi 0, %s133
    %s153 = sphi 0, %s155
    %s156 = sphi 0, %s153
    %s157 = sphi 0, %s156
    %s173 = sphi 0, %s157
  $region4: #{_concat_block.1} parent=0 // loop_header_branch
    %15 = sbr.rel (%p13) target = $region8
  $region5: #{_concat_block.1} parent=0 // loop_body
    %s17 = ssub.s32 %s12, 1
    %s18 = ssub.s32 %s12, 2
    %s19 = sadd.s32 %s12, 1
    %s20 = ssub.s32 %s12, %s19
    %p21 = scmp.eq.s32.totalorder %s20, 0
    %s23 = sadd.s32 %s22, 1
    %s24 = scalar_select %p21, %s22, %s23
    %p27 = pneg %p21
    %p28 = scmp.eq.s32.totalorder %s12, 1
    %p29 = por %p27, %p28
    %p30 = scmp.ne.s32.totalorder %s22, %s25
    %p31 = scmp.eq.s32.totalorder %s12, 0
    %p32 = por %p30, %p31
    %p33 = scmp.ne.s32.totalorder %s22, %s25
    %p34 = scmp.eq.s32.totalorder %s17, 1
    %p35 = por %p33, %p34
    %p36 = scmp.ne.s32.totalorder %s25, %s26
    %p37 = scmp.eq.s32.totalorder %s17, 0
    %p38 = por %p36, %p37
    %p39 = scmp.ne.s32.totalorder %s25, %s26
    %p40 = scmp.eq.s32.totalorder %s18, 1
    %p41 = por %p39, %p40
    %p43 = scmp.ne.s32.totalorder %s26, %s42
    %p44 = scmp.eq.s32.totalorder %s18, 0
    %p45 = por %p43, %p44
    %s47 = sadd.s32 %s46, 1
    %p50 = scmp.eq.s32.totalorder %s12, 1
    %p51 = scmp.ne.s32.totalorder %s46, %s48
    %p52 = scmp.eq.s32.totalorder %s12, 0
    %p53 = por %p51, %p52
    %p54 = scmp.ne.s32.totalorder %s46, %s48
    %p55 = scmp.eq.s32.totalorder %s17, 1
    %p56 = por %p54, %p55
    %p57 = scmp.ne.s32.totalorder %s48, %s49
    %p58 = scmp.eq.s32.totalorder %s17, 0
    %p59 = por %p57, %p58
    %p60 = scmp.ne.s32.totalorder %s48, %s49
    %p61 = scmp.eq.s32.totalorder %s18, 1
    %p62 = por %p60, %p61
    %p64 = scmp.ne.s32.totalorder %s49, %s63
    %p65 = scmp.eq.s32.totalorder %s18, 0
    %p66 = por %p64, %p65
    %s68 = sadd.s32 %s67, 1
    %p71 = scmp.eq.s32.totalorder %s12, 1
    %p72 = scmp.ne.s32.totalorder %s67, %s69
    %p73 = scmp.eq.s32.totalorder %s12, 0
    %p74 = por %p72, %p73
    %p75 = scmp.ne.s32.totalorder %s67, %s69
    %p76 = scmp.eq.s32.totalorder %s17, 1
    %p77 = por %p75, %p76
    %p78 = scmp.ne.s32.totalorder %s69, %s70
    %p79 = scmp.eq.s32.totalorder %s17, 0
    %p80 = por %p78, %p79
    %p81 = scmp.ne.s32.totalorder %s69, %s70
    %p82 = scmp.eq.s32.totalorder %s18, 1
    %p83 = por %p81, %p82
    %p85 = scmp.ne.s32.totalorder %s70, %s84
    %p86 = scmp.eq.s32.totalorder %s18, 0
    %p87 = por %p85, %p86
    %s89 = sadd.s32 %s88, 1
    %p92 = scmp.eq.s32.totalorder %s12, 1
    %p93 = scmp.ne.s32.totalorder %s88, %s90
    %p94 = scmp.eq.s32.totalorder %s12, 0
    %p95 = por %p93, %p94
    %p96 = scmp.ne.s32.totalorder %s88, %s90
    %p97 = scmp.eq.s32.totalorder %s17, 1
    %p98 = por %p96, %p97
    %p99 = scmp.ne.s32.totalorder %s90, %s91
    %p100 = scmp.eq.s32.totalorder %s17, 0
    %p101 = por %p99, %p100
    %p102 = scmp.ne.s32.totalorder %s90, %s91
    %p103 = scmp.eq.s32.totalorder %s18, 1
    %p104 = por %p102, %p103
    %p106 = scmp.ne.s32.totalorder %s91, %s105
    %p107 = scmp.eq.s32.totalorder %s18, 0
    %p108 = por %p106, %p107
    %s110 = sadd.s32 %s109, 1
    %p113 = scmp.eq.s32.totalorder %s12, 1
    %p114 = scmp.ne.s32.totalorder %s109, %s111
    %p115 = scmp.eq.s32.totalorder %s12, 0
    %p116 = por %p114, %p115
    %p117 = scmp.ne.s32.totalorder %s109, %s111
    %p118 = scmp.eq.s32.totalorder %s17, 1
    %p119 = por %p117, %p118
    %p120 = scmp.ne.s32.totalorder %s111, %s112
    %p121 = scmp.eq.s32.totalorder %s17, 0
    %p122 = por %p120, %p121
    %p123 = scmp.ne.s32.totalorder %s111, %s112
    %p124 = scmp.eq.s32.totalorder %s18, 1
    %p125 = por %p123, %p124
    %p127 = scmp.ne.s32.totalorder %s112, %s126
    %p128 = scmp.eq.s32.totalorder %s18, 0
    %p129 = por %p127, %p128
    %s131 = sadd.s32 %s130, 1
    %p134 = scmp.eq.s32.totalorder %s12, 1
    %p135 = scmp.ne.s32.totalorder %s130, %s132
    %p136 = scmp.eq.s32.totalorder %s12, 0
    %p137 = por %p135, %p136
    %p138 = scmp.ne.s32.totalorder %s130, %s132
    %p139 = scmp.eq.s32.totalorder %s17, 1
    %p140 = por %p138, %p139
    %p141 = scmp.ne.s32.totalorder %s132, %s133
    %p142 = scmp.eq.s32.totalorder %s17, 0
    %p143 = por %p141, %p142
    %p144 = scmp.ne.s32.totalorder %s132, %s133
    %p145 = scmp.eq.s32.totalorder %s18, 1
    %p146 = por %p144, %p145
    %p148 = scmp.ne.s32.totalorder %s133, %s147
    %p149 = scmp.eq.s32.totalorder %s18, 0
    %p150 = por %p148, %p149
    %s151 = ssub.s32 %s12, %s19
    %p152 = scmp.eq.s32.totalorder %s151, 0
    %s154 = sadd.s32 %s153, 1
    %s155 = scalar_select %p152, %s153, %s154
    %p158 = pneg %p152
    %p159 = scmp.eq.s32.totalorder %s12, 1
    %p160 = por %p158, %p159
    %p161 = scmp.ne.s32.totalorder %s153, %s156
    %p162 = scmp.eq.s32.totalorder %s12, 0
    %p163 = por %p161, %p162
    %p164 = scmp.ne.s32.totalorder %s153, %s156
    %p165 = scmp.eq.s32.totalorder %s17, 1
    %p166 = por %p164, %p165
    %p167 = scmp.ne.s32.totalorder %s156, %s157
    %p168 = scmp.eq.s32.totalorder %s17, 0
    %p169 = por %p167, %p168
    %p170 = scmp.ne.s32.totalorder %s156, %s157
    %p171 = scmp.eq.s32.totalorder %s18, 1
    %p172 = por %p170, %p171
    %p174 = scmp.ne.s32.totalorder %s157, %s173
    %p175 = scmp.eq.s32.totalorder %s18, 0
    %p176 = por %p174, %p175
    %p177 = scmp.le.s32.totalorder 1, %s12
    %p178 = scmp.lt.s32.totalorder %s12, 3
    %p179 = pnand %p177, %p178
    %p180 = pneg %p179
    // Predicated region
    $region9: #{_concat_block.1} parent=5 // pred_check
      _
    $region10: #{_concat_block.1} parent=5 // pred_check_branch
      %182 = sbr.rel (%p179) target = $region12
    $region11: #{_concat_block.1} parent=5 // pred_region
      %s183 = ssub.s32 %s12, 1
      // Predicated region
      $region13: #{_concat_block.1} parent=11 // pred_check
        %p184 = pneg %p59
      $region14: #{_concat_block.1} parent=11 // pred_check_branch
        %186 = sbr.rel (%p184) target = $region16
      $region15: #{_concat_block.1} parent=11 // pred_region
        _
      $region16: #{_concat_block.1} parent=11 // pred_fallthru
        _
      // Predicated region
      $region17: #{_concat_block.1} parent=11 // pred_check
        %p187 = pneg %p80
      $region18: #{_concat_block.1} parent=11 // pred_check_branch
        %189 = sbr.rel (%p187) target = $region20
      $region19: #{_concat_block.1} parent=11 // pred_region
        _
      $region20: #{_concat_block.1} parent=11 // pred_fallthru
        _
      // Predicated region
      $region21: #{_concat_block.1} parent=11 // pred_check
        %p190 = pneg %p101
      $region22: #{_concat_block.1} parent=11 // pred_check_branch
        %192 = sbr.rel (%p190) target = $region24
      $region23: #{_concat_block.1} parent=11 // pred_region
        _
      $region24: #{_concat_block.1} parent=11 // pred_fallthru
        _
      // Predicated region
      $region25: #{_concat_block.1} parent=11 // pred_check
        %p193 = pneg %p122
      $region26: #{_concat_block.1} parent=11 // pred_check_branch
        %195 = sbr.rel (%p193) target = $region28
      $region27: #{_concat_block.1} parent=11 // pred_region
        _
      $region28: #{_concat_block.1} parent=11 // pred_fallthru
        _
      // Predicated region
      $region29: #{_concat_block.1} parent=11 // pred_check
        %p196 = pneg %p143
      $region30: #{_concat_block.1} parent=11 // pred_check_branch
        %198 = sbr.rel (%p196) target = $region32
      $region31: #{_concat_block.1} parent=11 // pred_region
        _
      $region32: #{_concat_block.1} parent=11 // pred_fallthru
        _
    $region12: #{_concat_block.1} parent=5 // pred_fallthru
      _
    %p199 = scmp.lt.s32.totalorder %s12, 2
    // Predicated region
    $region33: #{_concat_block.1} parent=5 // pred_check
      %p200 = pneg %p199
    $region34: #{_concat_block.1} parent=5 // pred_check_branch
      %202 = sbr.rel (%p200) target = $region36
    $region35: #{_concat_block.1} parent=5 // pred_region
      // Predicated region
      $region37: #{_concat_block.1} parent=35 // pred_check
        %p203 = pneg %p32
      $region38: #{_concat_block.1} parent=35 // pred_check_branch
        %205 = sbr.rel (%p203) target = $region40
      $region39: #{_concat_block.1} parent=35 // pred_region
        %p206 = scmp.lt.s32.totalorder %s12, 1
        %s207 = scalar_select %p206, %s12, 1
        %s208 = smul.addr %s207, 2
        %s209 = smul.addr %s208, 4
        %s210 = scalar_lea.vmem %s0, %s209
      $region40: #{_concat_block.1} parent=35 // pred_fallthru
        _
    $region36: #{_concat_block.1} parent=5 // pred_fallthru
      _
    %p211 = scmp.le.s32.totalorder 1, %s12
    %p212 = scmp.lt.s32.totalorder %s12, 3
    %p213 = pnand %p211, %p212
    %p214 = pneg %p213
    // Predicated region
    $region41: #{_concat_block.1} parent=5 // pred_check
      _
    $region42: #{_concat_block.1} parent=5 // pred_check_branch
      %216 = sbr.rel (%p213) target = $region44
    $region43: #{_concat_block.1} parent=5 // pred_region
      %s217 = ssub.s32 %s12, 1
      %p218 = scmp.lt.s32.totalorder %s17, 1
      %s219 = scalar_select %p218, %s17, 1
      %s220 = smul.addr %s219, 2
      %s221 = smul.addr %s220, 4
      %s222 = scalar_lea.vmem %s0, %s221
      %p223 = pneg %p38
      %p224 = pneg %p35
      %p225 = pneg %p59
      %p226 = pneg %p56
      %p227 = pneg %p80
      %p228 = pneg %p77
      %p229 = pneg %p101
      %p230 = pneg %p98
      %p231 = pneg %p122
      %p232 = pneg %p119
      %p233 = pneg %p143
      %p234 = pneg %p140
      %p235 = pneg %p169
      %p236 = pneg %p166
      %p237 = scmp.lt.s32.totalorder %s17, 1
      %s238 = scalar_select %p237, %s17, 1
      %s239 = smul.addr %s238, 4
      %s240 = smul.addr %s239, 8
      %s241 = scalar_lea.vmem %s6, %s240
      %p242 = scmp.lt.s32.totalorder %s17, 1
      %s243 = scalar_select %p242, %s17, 1
      %s244 = smul.addr %s243, 2
      %s245 = smul.addr %s244, 4
      %s246 = scalar_lea.vmem %s0, %s245
      %p247 = scmp.lt.s32.totalorder %s17, 1
      %s248 = scalar_select %p247, %s17, 1
      %s249 = smul.addr %s248, 4
      %s250 = smul.addr %s249, 8
      %s251 = scalar_lea.vmem %s6, %s250
      %v252 = vld [vmem:[%s5] sm:$0xff]
      %v253 = vld [vmem:[%s5 + $0x8] sm:$0xff]
      %v254 = vld [vmem:[%s246] sm:$0xff]
      %v255 = vld [vmem:[%s1] sm:$0xff]
      %v256 = vld [vmem:[%s1 + $0x8] sm:$0xff]
      %258 = vset.pattern.permute.xlu0 0
      %259 = vperm.xlu0 %258, %v252
      %v260 = vpop.permute.xlu0 %259
      %263 = vset.pattern.permute.xlu0 0
      %264 = vperm.xlu0 %263, %v253
      %v265 = vpop.permute.xlu0 %264
      %v268 = vcombine.high %v254, %v254
      %vm269 = vcmask 31744
      %v271 = vsel %vm269, %v255, 0
      %v274 = vsel %vm269, %v256, 0
      %vm276 = vcmask 1043456
      %v277 = vsel %vm276, %v254, 0
      %v279 = vsel %vm276, %v268, 0
      %281 = vmatprep.subr.mxu0 %v279
      %282 = vmatpush1.msra.mxu0 %v277
      %283 = vmatprep.subr.mxu0 0.0
      %284 = vmatpush1.msra.mxu0 0.0
      %285 = vmatprep.subr.mxu0 0.0
      %286 = vmatpush1.msra.mxu0 0.0
      %287 = vmatprep.subr.mxu0 0.0
      %288 = vmatpush1.msra.mxu0 0.0
      %289 = vmatprep.subr.mxu0 0.0
      %290 = vmatpush1.msra.mxu0 0.0
      %291 = vmatprep.subr.mxu0 0.0
      %292 = vmatpush1.msra.mxu0 0.0
      %293 = vmatprep.subr.mxu0 0.0
      %294 = vmatpush1.msra.mxu0 0.0
      %295 = vmatprep.subr.mxu0 0.0
      %296 = vmatpush1.msra.mxu0 0.0
      %297 = vmatprep.subr.mxu0 0.0
      %298 = vmatpush1.msra.mxu0 0.0
      %299 = vmatprep.subr.mxu0 0.0
      %300 = vmatpush1.msra.mxu0 0.0
      %301 = vmatprep.subr.mxu0 0.0
      %302 = vmatpush1.msra.mxu0 0.0
      %303 = vmatprep.subr.mxu0 0.0
      %304 = vmatpush1.msra.mxu0 0.0
      %305 = vmatprep.subr.mxu0 0.0
      %306 = vmatpush1.msra.mxu0 0.0
      %307 = vmatprep.subr.mxu0 0.0
      %308 = vmatpush1.msra.mxu0 0.0
      %309 = vmatprep.subr.mxu0 0.0
      %310 = vmatpush1.msra.mxu0 0.0
      %311 = vmatprep.subr.mxu0 0.0
      %312 = vmatpush1.msra.mxu0 0.0
      %313 = vmatprep.subr.mxu0 0.0
      %314 = vmatpush1.msra.mxu0 0.0
      %315 = vmatprep.subr.mxu0 0.0
      %316 = vmatpush1.msra.mxu0 0.0
      %317 = vmatprep.subr.mxu0 0.0
      %318 = vmatpush1.msra.mxu0 0.0
      %319 = vmatprep.subr.mxu0 0.0
      %320 = vmatpush1.msra.mxu0 0.0
      %321 = vmatprep.subr.mxu0 0.0
      %322 = vmatpush1.msra.mxu0 0.0
      %323 = vmatprep.subr.mxu0 0.0
      %324 = vmatpush1.msra.mxu0 0.0
      %325 = vmatprep.subr.mxu0 0.0
      %326 = vmatpush1.msra.mxu0 0.0
      %327 = vmatprep.subr.mxu0 0.0
      %328 = vmatpush1.msra.mxu0 0.0
      %329 = vmatprep.subr.mxu0 0.0
      %330 = vmatpush1.msra.mxu0 0.0
      %331 = vmatprep.subr.mxu0 0.0
      %332 = vmatpush1.msra.mxu0 0.0
      %333 = vmatprep.subr.mxu0 0.0
      %334 = vmatpush1.msra.mxu0 0.0
      %335 = vmatprep.subr.mxu0 0.0
      %336 = vmatpush1.msra.mxu0 0.0
      %337 = vmatprep.subr.mxu0 0.0
      %338 = vmatpush1.msra.mxu0 0.0
      %339 = vmatprep.subr.mxu0 0.0
      %340 = vmatpush1.msra.mxu0 0.0
      %341 = vmatprep.subr.mxu0 0.0
      %342 = vmatpush1.msra.mxu0 0.0
      %343 = vmatprep.subr.mxu0 0.0
      %344 = vmatpush1.msra.mxu0 0.0
      %345 = vmatprep.mubr.f32.mxu0 0.0
      %346 = vmatmul.mubr.f32.gmra.mrb[0].mxu0 %v271
      %v347 = vpop.f32.mrb[0].mxu0
      %v348 = vadd.f32 %v260, %v347
      %v349 = vpop.f32.mrb[0].mxu0
      %v350 = vadd.f32 %v260, %v349
      %351 = vmatprep.mubr.f32.mxu0 0.0
      %352 = vmatmul.mubr.f32.gmra.mrb[0].mxu0 %v274
      %v353 = vpop.f32.mrb[0].mxu0
      %v354 = vadd.f32 %v265, %v353
      %v355 = vpop.f32.mrb[0].mxu0
      %v356 = vadd.f32 %v265, %v355
      %357 = vdwg.mxu0
      %v358 = vmax.f32 %v348, 0.0
      %v359 = vmax.f32 %v350, 0.0
      %v360 = vmax.f32 %v354, 0.0
      %v361 = vmax.f32 %v356, 0.0
      %v362 = vlaneseq
      %v363 = vand.u32 %v362, 127
      %v364 = vadd.s32 %v363, 128
      %v365 = vand.u32 %v363, 15
      %v366 = vand.u32 %v364, 15
      %v367 = vshra.s32 %v363, 4
      %v368 = vshra.s32 %v364, 4
      %v369 = vand.u32 %v367, 15
      %v370 = vand.u32 %v368, 15
      %371 = vrot.lane.b32.xlu0 %v360, 17
      %v372 = vpop.permute.xlu0 %371
      %373 = vrot.lane.b32.xlu0 %v361, 17
      %v374 = vpop.permute.xlu0 %373
      %vm375 = vcmp.lt.s32.totalorder %v363, 17
      %v376 = vsel %vm375, %v372, %v374
      %v377 = vsel %vm375, %v374, %v372
      %vm378 = vcmp.ge.s32.totalorder %v369, 1
      %vm379 = vcmp.ge.s32.totalorder %v370, 1
      %vm380 = vcmp.ge.s32.totalorder %v365, 1
      %vm381 = vcmp.ge.s32.totalorder %v366, 1
      %vm382 = vmand %vm378, %vm380
      %vm383 = vmand %vm379, %vm381
      %v384 = vsel %vm382, 1, 0
      %v385 = vsel %vm383, 1, 0
      %vm386 = vcmp.eq.s32.totalorder %v384, 1
      %vm387 = vcmp.eq.s32.totalorder %v385, 1
      %v388 = vsel %vm386, %v377, 0.0
      %v389 = vsel %vm387, %v376, 0.0
      %390 = vrot.lane.b32.xlu0 %v360, 16
      %v391 = vpop.permute.xlu0 %390
      %392 = vrot.lane.b32.xlu0 %v361, 16
      %v393 = vpop.permute.xlu0 %392
      %vm394 = vcmp.lt.s32.totalorder %v363, 16
      %v395 = vsel %vm394, %v391, %v393
      %v396 = vsel %vm394, %v393, %v391
      %v397 = vsel %vm378, 1, 0
      %v398 = vsel %vm379, 1, 0
      %vm399 = vcmp.eq.s32.totalorder %v397, 1
      %vm400 = vcmp.eq.s32.totalorder %v398, 1
      %v401 = vsel %vm399, %v396, 0.0
      %v402 = vsel %vm400, %v395, 0.0
      %403 = vrot.lane.b32.xlu0 %v360, 15
      %v404 = vpop.permute.xlu0 %403
      %405 = vrot.lane.b32.xlu0 %v361, 15
      %v406 = vpop.permute.xlu0 %405
      %vm407 = vcmp.lt.s32.totalorder %v363, 15
      %v408 = vsel %vm407, %v404, %v406
      %v409 = vsel %vm407, %v406, %v404
      %vm410 = vcmp.lt.s32.totalorder %v365, 15
      %vm411 = vcmp.lt.s32.totalorder %v366, 15
      %vm412 = vmand %vm378, %vm410
      %vm413 = vmand %vm379, %vm411
      %v414 = vsel %vm412, 1, 0
      %v415 = vsel %vm413, 1, 0
      %vm416 = vcmp.eq.s32.totalorder %v414, 1
      %vm417 = vcmp.eq.s32.totalorder %v415, 1
      %v418 = vsel %vm416, %v409, 0.0
      %v419 = vsel %vm417, %v408, 0.0
      %420 = vrot.lane.b32.xlu0 %v360, 1
      %v421 = vpop.permute.xlu0 %420
      %422 = vrot.lane.b32.xlu0 %v361, 1
      %v423 = vpop.permute.xlu0 %422
      %vm424 = vcmp.lt.s32.totalorder %v363, 1
      %v425 = vsel %vm424, %v421, %v423
      %v426 = vsel %vm424, %v423, %v421
      %v427 = vsel %vm380, 1, 0
      %v428 = vsel %vm381, 1, 0
      %vm429 = vcmp.eq.s32.totalorder %v427, 1
      %vm430 = vcmp.eq.s32.totalorder %v428, 1
      %v431 = vsel %vm429, %v426, 0.0
      %v432 = vsel %vm430, %v425, 0.0
      %433 = vrot.lane.b32.xlu0 %v360, 127
      %v434 = vpop.permute.xlu0 %433
      %435 = vrot.lane.b32.xlu0 %v361, 127
      %v436 = vpop.permute.xlu0 %435
      %vm437 = vcmp.lt.s32.totalorder %v363, 127
      %v438 = vsel %vm437, %v434, %v436
      %v439 = vsel %vm437, %v436, %v434
      %v440 = vsel %vm410, 1, 0
      %v441 = vsel %vm411, 1, 0
      %vm442 = vcmp.eq.s32.totalorder %v440, 1
      %vm443 = vcmp.eq.s32.totalorder %v441, 1
      %v444 = vsel %vm442, %v438, 0.0
      %v445 = vsel %vm443, %v439, 0.0
      %446 = vrot.lane.b32.xlu0 %v360, 113
      %v447 = vpop.permute.xlu0 %446
      %448 = vrot.lane.b32.xlu0 %v361, 113
      %v449 = vpop.permute.xlu0 %448
      %vm450 = vcmp.lt.s32.totalorder %v363, 113
      %v451 = vsel %vm450, %v447, %v449
      %v452 = vsel %vm450, %v449, %v447
      %vm453 = vcmp.lt.s32.totalorder %v369, 15
      %vm454 = vcmp.lt.s32.totalorder %v370, 15
      %vm455 = vmand %vm453, %vm380
      %vm456 = vmand %vm454, %vm381
      %v457 = vsel %vm455, 1, 0
      %v458 = vsel %vm456, 1, 0
      %vm459 = vcmp.eq.s32.totalorder %v457, 1
      %vm460 = vcmp.eq.s32.totalorder %v458, 1
      %v461 = vsel %vm459, %v451, 0.0
      %v462 = vsel %vm460, %v452, 0.0
      %463 = vrot.lane.b32.xlu0 %v360, 112
      %v464 = vpop.permute.xlu0 %463
      %465 = vrot.lane.b32.xlu0 %v361, 112
      %v466 = vpop.permute.xlu0 %465
      %vm467 = vcmp.lt.s32.totalorder %v363, 112
      %v468 = vsel %vm467, %v464, %v466
      %v469 = vsel %vm467, %v466, %v464
      %v470 = vsel %vm453, 1, 0
      %v471 = vsel %vm454, 1, 0
      %vm472 = vcmp.eq.s32.totalorder %v470, 1
      %vm473 = vcmp.eq.s32.totalorder %v471, 1
      %v474 = vsel %vm472, %v468, 0.0
      %v475 = vsel %vm473, %v469, 0.0
      %476 = vrot.lane.b32.xlu0 %v360, 111
      %v477 = vpop.permute.xlu0 %476
      %478 = vrot.lane.b32.xlu0 %v361, 111
      %v479 = vpop.permute.xlu0 %478
      %vm480 = vcmp.lt.s32.totalorder %v363, 111
      %v481 = vsel %vm480, %v477, %v479
      %v482 = vsel %vm480, %v479, %v477
      %vm483 = vmand %vm453, %vm410
      %vm484 = vmand %vm454, %vm411
      %v485 = vsel %vm483, 1, 0
      %v486 = vsel %vm484, 1, 0
      %vm487 = vcmp.eq.s32.totalorder %v485, 1
      %vm488 = vcmp.eq.s32.totalorder %v486, 1
      %v489 = vsel %vm487, %v481, 0.0
      %v490 = vsel %vm488, %v482, 0.0
      %v491 = vld [vmem:[%s2] sm:$0xff]
      %492 = vset.pattern.permute.xlu0 1
      %493 = vperm.xlu0 %492, %v252
      %v494 = vpop.permute.xlu0 %493
      %vm496 = vcmask 588800
      %v498 = vsel %vm496, %v491, 0
      %500 = vmatprep.subr.mxu0 %v389
      %501 = vmatpush1.msra.mxu0 %v388
      %502 = vmatprep.subr.mxu0 %v402
      %503 = vmatpush1.msra.mxu0 %v401
      %504 = vmatprep.subr.mxu0 %v419
      %505 = vmatpush1.msra.mxu0 %v418
      %506 = vmatprep.subr.mxu0 %v432
      %507 = vmatpush1.msra.mxu0 %v431
      %508 = vmatprep.subr.mxu0 %v361
      %509 = vmatpush1.msra.mxu0 %v360
      %510 = vmatprep.subr.mxu0 %v445
      %511 = vmatpush1.msra.mxu0 %v444
      %512 = vmatprep.subr.mxu0 %v462
      %513 = vmatpush1.msra.mxu0 %v461
      %514 = vmatprep.subr.mxu0 %v475
      %515 = vmatpush1.msra.mxu0 %v474
      %516 = vmatprep.subr.mxu0 %v490
      %517 = vmatpush1.msra.mxu0 %v489
      %518 = vmatprep.subr.mxu0 0.0
      %519 = vmatpush1.msra.mxu0 0.0
      %520 = vmatprep.subr.mxu0 0.0
      %521 = vmatpush1.msra.mxu0 0.0
      %522 = vmatprep.subr.mxu0 0.0
      %523 = vmatpush1.msra.mxu0 0.0
      %524 = vmatprep.subr.mxu0 0.0
      %525 = vmatpush1.msra.mxu0 0.0
      %526 = vmatprep.subr.mxu0 0.0
      %527 = vmatpush1.msra.mxu0 0.0
      %528 = vmatprep.subr.mxu0 0.0
      %529 = vmatpush1.msra.mxu0 0.0
      %530 = vmatprep.subr.mxu0 0.0
      %531 = vmatpush1.msra.mxu0 0.0
      %532 = vmatprep.subr.mxu0 0.0
      %533 = vmatpush1.msra.mxu0 0.0
      %534 = vmatprep.subr.mxu0 0.0
      %535 = vmatpush1.msra.mxu0 0.0
      %536 = vmatprep.subr.mxu0 0.0
      %537 = vmatpush1.msra.mxu0 0.0
      %538 = vmatprep.subr.mxu0 0.0
      %539 = vmatpush1.msra.mxu0 0.0
      %540 = vmatprep.subr.mxu0 0.0
      %541 = vmatpush1.msra.mxu0 0.0
      %542 = vmatprep.subr.mxu0 0.0
      %543 = vmatpush1.msra.mxu0 0.0
      %544 = vmatprep.subr.mxu0 0.0
      %545 = vmatpush1.msra.mxu0 0.0
      %546 = vmatprep.subr.mxu0 0.0
      %547 = vmatpush1.msra.mxu0 0.0
      %548 = vmatprep.subr.mxu0 0.0
      %549 = vmatpush1.msra.mxu0 0.0
      %550 = vmatprep.subr.mxu0 0.0
      %551 = vmatpush1.msra.mxu0 0.0
      %552 = vmatprep.subr.mxu0 0.0
      %553 = vmatpush1.msra.mxu0 0.0
      %554 = vmatprep.subr.mxu0 0.0
      %555 = vmatpush1.msra.mxu0 0.0
      %556 = vmatprep.subr.mxu0 0.0
      %557 = vmatpush1.msra.mxu0 0.0
      %558 = vmatprep.subr.mxu0 0.0
      %559 = vmatpush1.msra.mxu0 0.0
      %560 = vmatprep.subr.mxu0 0.0
      %561 = vmatpush1.msra.mxu0 0.0
      %562 = vmatprep.subr.mxu0 0.0
      %563 = vmatpush1.msra.mxu0 0.0
      %564 = vmatprep.mubr.f32.mxu0 0.0
      %565 = vmatmul.mubr.f32.gmra.mrb[0].mxu0 %v498
      %v566 = vpop.f32.mrb[0].mxu0
      %v567 = vadd.f32 %v494, %v566
      %v568 = vpop.f32.mrb[0].mxu0
      %v569 = vadd.f32 %v494, %v568
      %570 = vdwg.mxu0
      %v571 = vmax.f32 %v567, 0.0
      %v572 = vmax.f32 %v569, 0.0
      %573 = vrot.lane.b32.xlu0 %v571, 17
      %v574 = vpop.permute.xlu0 %573
      %575 = vrot.lane.b32.xlu0 %v572, 17
      %v576 = vpop.permute.xlu0 %575
      %v577 = vsel %vm375, %v574, %v576
      %v578 = vsel %vm375, %v576, %v574
      %v579 = vsel %vm386, %v578, 0.0
      %v580 = vsel %vm387, %v577, 0.0
      %581 = vrot.lane.b32.xlu0 %v571, 16
      %v582 = vpop.permute.xlu0 %581
      %583 = vrot.lane.b32.xlu0 %v572, 16
      %v584 = vpop.permute.xlu0 %583
      %v585 = vsel %vm394, %v582, %v584
      %v586 = vsel %vm394, %v584, %v582
      %v587 = vsel %vm399, %v586, 0.0
      %v588 = vsel %vm400, %v585, 0.0
      %589 = vrot.lane.b32.xlu0 %v571, 15
      %v590 = vpop.permute.xlu0 %589
      %591 = vrot.lane.b32.xlu0 %v572, 15
      %v592 = vpop.permute.xlu0 %591
      %v593 = vsel %vm407, %v590, %v592
      %v594 = vsel %vm407, %v592, %v590
      %v595 = vsel %vm416, %v594, 0.0
      %v596 = vsel %vm417, %v593, 0.0
      %597 = vrot.lane.b32.xlu0 %v571, 1
      %v598 = vpop.permute.xlu0 %597
      %599 = vrot.lane.b32.xlu0 %v572, 1
      %v600 = vpop.permute.xlu0 %599
      %v601 = vsel %vm424, %v598, %v600
      %v602 = vsel %vm424, %v600, %v598
      %v603 = vsel %vm429, %v602, 0.0
      %v604 = vsel %vm430, %v601, 0.0
      %605 = vrot.lane.b32.xlu0 %v571, 127
      %v606 = vpop.permute.xlu0 %605
      %607 = vrot.lane.b32.xlu0 %v572, 127
      %v608 = vpop.permute.xlu0 %607
      %v609 = vsel %vm437, %v606, %v608
      %v610 = vsel %vm437, %v608, %v606
      %v611 = vsel %vm442, %v609, 0.0
      %v612 = vsel %vm443, %v610, 0.0
      %613 = vrot.lane.b32.xlu0 %v571, 113
      %v614 = vpop.permute.xlu0 %613
      %615 = vrot.lane.b32.xlu0 %v572, 113
      %v616 = vpop.permute.xlu0 %615
      %v617 = vsel %vm450, %v614, %v616
      %v618 = vsel %vm450, %v616, %v614
      %v619 = vsel %vm459, %v617, 0.0
      %v620 = vsel %vm460, %v618, 0.0
      %621 = vrot.lane.b32.xlu0 %v571, 112
      %v622 = vpop.permute.xlu0 %621
      %623 = vrot.lane.b32.xlu0 %v572, 112
      %v624 = vpop.permute.xlu0 %623
      %v625 = vsel %vm467, %v622, %v624
      %v626 = vsel %vm467, %v624, %v622
      %v627 = vsel %vm472, %v625, 0.0
      %v628 = vsel %vm473, %v626, 0.0
      %629 = vrot.lane.b32.xlu0 %v571, 111
      %v630 = vpop.permute.xlu0 %629
      %631 = vrot.lane.b32.xlu0 %v572, 111
      %v632 = vpop.permute.xlu0 %631
      %v633 = vsel %vm480, %v630, %v632
      %v634 = vsel %vm480, %v632, %v630
      %v635 = vsel %vm487, %v633, 0.0
      %v636 = vsel %vm488, %v634, 0.0
      %v637 = vld [vmem:[%s3] sm:$0xff]
      %638 = vset.pattern.permute.xlu0 2
      %639 = vperm.xlu0 %638, %v252
      %v640 = vpop.permute.xlu0 %639
      %v643 = vsel %vm496, %v637, 0
      %645 = vmatprep.subr.mxu0 %v580
      %646 = vmatpush1.msra.mxu0 %v579
      %647 = vmatprep.subr.mxu0 %v588
      %648 = vmatpush1.msra.mxu0 %v587
      %649 = vmatprep.subr.mxu0 %v596
      %650 = vmatpush1.msra.mxu0 %v595
      %651 = vmatprep.subr.mxu0 %v604
      %652 = vmatpush1.msra.mxu0 %v603
      %653 = vmatprep.subr.mxu0 %v572
      %654 = vmatpush1.msra.mxu0 %v571
      %655 = vmatprep.subr.mxu0 %v612
      %656 = vmatpush1.msra.mxu0 %v611
      %657 = vmatprep.subr.mxu0 %v620
      %658 = vmatpush1.msra.mxu0 %v619
      %659 = vmatprep.subr.mxu0 %v628
      %660 = vmatpush1.msra.mxu0 %v627
      %661 = vmatprep.subr.mxu0 %v636
      %662 = vmatpush1.msra.mxu0 %v635
      %663 = vmatprep.subr.mxu0 0.0
      %664 = vmatpush1.msra.mxu0 0.0
      %665 = vmatprep.subr.mxu0 0.0
      %666 = vmatpush1.msra.mxu0 0.0
      %667 = vmatprep.subr.mxu0 0.0
      %668 = vmatpush1.msra.mxu0 0.0
      %669 = vmatprep.subr.mxu0 0.0
      %670 = vmatpush1.msra.mxu0 0.0
      %671 = vmatprep.subr.mxu0 0.0
      %672 = vmatpush1.msra.mxu0 0.0
      %673 = vmatprep.subr.mxu0 0.0
      %674 = vmatpush1.msra.mxu0 0.0
      %675 = vmatprep.subr.mxu0 0.0
      %676 = vmatpush1.msra.mxu0 0.0
      %677 = vmatprep.subr.mxu0 0.0
      %678 = vmatpush1.msra.mxu0 0.0
      %679 = vmatprep.subr.mxu0 0.0
      %680 = vmatpush1.msra.mxu0 0.0
      %681 = vmatprep.subr.mxu0 0.0
      %682 = vmatpush1.msra.mxu0 0.0
      %683 = vmatprep.subr.mxu0 0.0
      %684 = vmatpush1.msra.mxu0 0.0
      %685 = vmatprep.subr.mxu0 0.0
      %686 = vmatpush1.msra.mxu0 0.0
      %687 = vmatprep.subr.mxu0 0.0
      %688 = vmatpush1.msra.mxu0 0.0
      %689 = vmatprep.subr.mxu0 0.0
      %690 = vmatpush1.msra.mxu0 0.0
      %691 = vmatprep.subr.mxu0 0.0
      %692 = vmatpush1.msra.mxu0 0.0
      %693 = vmatprep.subr.mxu0 0.0
      %694 = vmatpush1.msra.mxu0 0.0
      %695 = vmatprep.subr.mxu0 0.0
      %696 = vmatpush1.msra.mxu0 0.0
      %697 = vmatprep.subr.mxu0 0.0
      %698 = vmatpush1.msra.mxu0 0.0
      %699 = vmatprep.subr.mxu0 0.0
      %700 = vmatpush1.msra.mxu0 0.0
      %701 = vmatprep.subr.mxu0 0.0
      %702 = vmatpush1.msra.mxu0 0.0
      %703 = vmatprep.subr.mxu0 0.0
      %704 = vmatpush1.msra.mxu0 0.0
      %705 = vmatprep.subr.mxu0 0.0
      %706 = vmatpush1.msra.mxu0 0.0
      %707 = vmatprep.subr.mxu0 0.0
      %708 = vmatpush1.msra.mxu0 0.0
      %709 = vmatprep.mubr.f32.mxu0 0.0
      %710 = vmatmul.mubr.f32.gmra.mrb[0].mxu0 %v643
      %v711 = vpop.f32.mrb[0].mxu0
      %v712 = vadd.f32 %v640, %v711
      %v713 = vpop.f32.mrb[0].mxu0
      %v714 = vadd.f32 %v640, %v713
      %715 = vdwg.mxu0
      %v716 = vmax.f32 %v712, 0.0
      %v717 = vmax.f32 %v714, 0.0
      %v718 = vld [vmem:[%s4] sm:$0xff]
      %v719 = vld [vmem:[%s4 + $0x8] sm:$0xff]
      %720 = vset.pattern.permute.xlu0 3
      %721 = vperm.xlu0 %720, %v252
      %v722 = vpop.permute.xlu0 %721
      %724 = vset.pattern.permute.xlu0 3
      %725 = vperm.xlu0 %724, %v253
      %v726 = vpop.permute.xlu0 %725
      %vm728 = vcmask 261120
      %v730 = vsel %vm728, %v718, 0
      %v733 = vsel %vm728, %v719, 0
      %735 = vmatprep.subr.mxu0 %v359
      %736 = vmatpush1.msra.mxu0 %v358
      %737 = vmatprep.subr.mxu0 %v361
      %738 = vmatpush1.msra.mxu0 %v360
      %739 = vmatprep.subr.mxu0 %v572
      %740 = vmatpush1.msra.mxu0 %v571
      %741 = vmatprep.subr.mxu0 %v717
      %742 = vmatpush1.msra.mxu0 %v716
      %743 = vmatprep.subr.mxu0 0.0
      %744 = vmatpush1.msra.mxu0 0.0
      %745 = vmatprep.subr.mxu0 0.0
      %746 = vmatpush1.msra.mxu0 0.0
      %747 = vmatprep.subr.mxu0 0.0
      %748 = vmatpush1.msra.mxu0 0.0
      %749 = vmatprep.subr.mxu0 0.0
      %750 = vmatpush1.msra.mxu0 0.0
      %751 = vmatprep.subr.mxu0 0.0
      %752 = vmatpush1.msra.mxu0 0.0
      %753 = vmatprep.subr.mxu0 0.0
      %754 = vmatpush1.msra.mxu0 0.0
      %755 = vmatprep.subr.mxu0 0.0
      %756 = vmatpush1.msra.mxu0 0.0
      %757 = vmatprep.subr.mxu0 0.0
      %758 = vmatpush1.msra.mxu0 0.0
      %759 = vmatprep.subr.mxu0 0.0
      %760 = vmatpush1.msra.mxu0 0.0
      %761 = vmatprep.subr.mxu0 0.0
      %762 = vmatpush1.msra.mxu0 0.0
      %763 = vmatprep.subr.mxu0 0.0
      %764 = vmatpush1.msra.mxu0 0.0
      %765 = vmatprep.subr.mxu0 0.0
      %766 = vmatpush1.msra.mxu0 0.0
      %767 = vmatprep.subr.mxu0 0.0
      %768 = vmatpush1.msra.mxu0 0.0
      %769 = vmatprep.subr.mxu0 0.0
      %770 = vmatpush1.msra.mxu0 0.0
      %771 = vmatprep.subr.mxu0 0.0
      %772 = vmatpush1.msra.mxu0 0.0
      %773 = vmatprep.subr.mxu0 0.0
      %774 = vmatpush1.msra.mxu0 0.0
      %775 = vmatprep.subr.mxu0 0.0
      %776 = vmatpush1.msra.mxu0 0.0
      %777 = vmatprep.subr.mxu0 0.0
      %778 = vmatpush1.msra.mxu0 0.0
      %779 = vmatprep.subr.mxu0 0.0
      %780 = vmatpush1.msra.mxu0 0.0
      %781 = vmatprep.subr.mxu0 0.0
      %782 = vmatpush1.msra.mxu0 0.0
      %783 = vmatprep.subr.mxu0 0.0
      %784 = vmatpush1.msra.mxu0 0.0
      %785 = vmatprep.subr.mxu0 0.0
      %786 = vmatpush1.msra.mxu0 0.0
      %787 = vmatprep.subr.mxu0 0.0
      %788 = vmatpush1.msra.mxu0 0.0
      %789 = vmatprep.subr.mxu0 0.0
      %790 = vmatpush1.msra.mxu0 0.0
      %791 = vmatprep.subr.mxu0 0.0
      %792 = vmatpush1.msra.mxu0 0.0
      %793 = vmatprep.subr.mxu0 0.0
      %794 = vmatpush1.msra.mxu0 0.0
      %795 = vmatprep.subr.mxu0 0.0
      %796 = vmatpush1.msra.mxu0 0.0
      %797 = vmatprep.subr.mxu0 0.0
      %798 = vmatpush1.msra.mxu0 0.0
      %799 = vmatprep.mubr.f32.mxu0 0.0
      %800 = vmatmul.mubr.f32.gmra.mrb[0].mxu0 %v730
      %v801 = vpop.f32.mrb[0].mxu0
      %v802 = vadd.f32 %v722, %v801
      %v803 = vpop.f32.mrb[0].mxu0
      %v804 = vadd.f32 %v722, %v803
      %805 = vmatprep.mubr.f32.mxu0 0.0
      %806 = vmatmul.mubr.f32.gmra.mrb[0].mxu0 %v733
      %v807 = vpop.f32.mrb[0].mxu0
      %v808 = vadd.f32 %v726, %v807
      %v809 = vpop.f32.mrb[0].mxu0
      %v810 = vadd.f32 %v726, %v809
      %811 = vdwg.mxu0
      %v812 = vmax.f32 %v802, 0.0
      %v813 = vmax.f32 %v804, 0.0
      %v814 = vmax.f32 %v808, 0.0
      %v815 = vmax.f32 %v810, 0.0
      %816 = vst [vmem:[%s251] sm:$0xff] %v812
      %817 = vst [vmem:[%s251 + $0x8] sm:$0xff] %v813
      %818 = vst [vmem:[%s251 + $0x10] sm:$0xff] %v814
      %819 = vst [vmem:[%s251 + $0x18] sm:$0xff] %v815
      %p820 = scmp.lt.s32.totalorder %s17, 1
      %s821 = scalar_select %p820, %s17, 1
      %s822 = smul.addr %s821, 4
      %s823 = smul.addr %s822, 8
      %s824 = scalar_lea.vmem %s6, %s823
      // Predicated region
      $region45: #{_concat_block.1} parent=43 // pred_check
        %p825 = pneg %p166
      $region46: #{_concat_block.1} parent=43 // pred_check_branch
        %827 = sbr.rel (%p825) target = $region48
      $region47: #{_concat_block.1} parent=43 // pred_region
        _
      $region48: #{_concat_block.1} parent=43 // pred_fallthru
        _
    $region44: #{_concat_block.1} parent=5 // pred_fallthru
      _
    %p828 = scmp.le.s32.totalorder 2, %s12
    // Predicated region
    $region49: #{_concat_block.1} parent=5 // pred_check
      %p829 = pneg %p828
    $region50: #{_concat_block.1} parent=5 // pred_check_branch
      %831 = sbr.rel (%p829) target = $region52
    $region51: #{_concat_block.1} parent=5 // pred_region
      %s832 = ssub.s32 %s12, 2
      // Predicated region
      $region53: #{_concat_block.1} parent=51 // pred_check
        %p833 = pneg %p172
      $region54: #{_concat_block.1} parent=51 // pred_check_branch
        %835 = sbr.rel (%p833) target = $region56
      $region55: #{_concat_block.1} parent=51 // pred_region
        %p836 = scmp.lt.s32.totalorder %s18, 1
        %s837 = scalar_select %p836, %s18, 1
        %s838 = smul.addr %s837, 4
        %s839 = smul.addr %s838, 8
        %s840 = scalar_lea.vmem %s6, %s839
      $region56: #{_concat_block.1} parent=51 // pred_fallthru
        _
    $region52: #{_concat_block.1} parent=5 // pred_fallthru
      _
  $region6: #{_concat_block.1} parent=0 // loop_footer
    %s16 = sadd.s32 1, %s12
  $region7: #{_concat_block.1} parent=0 // loop_footer_branch
    %11 = sbr.rel target = $region3
  $region8: #{_concat_block.1} parent=0 // loop_exit
    _

</llo_original>
